<compile_context>
chip_gen: v6e
topology: v6e:2x2x1
jax: 0.10.0
libtpu: 0.0.40
codegen_flags: <defaults>
</compile_context>

<pallas_src>
import math

import jax
import jax.numpy as jnp
from jax.experimental import pallas as pl
from jax.experimental.pallas import tpu as pltpu

_SQRT_2_OVER_PI = math.sqrt(2.0 / math.pi)
_LANES_FALLBACK = 512          # lane-dense last dim for the flatten path
_TARGET_BLOCK_ELEMS = 1 << 20  # ~4 MiB f32 / ~2 MiB bf16 per block buffer


# ------------------------------ Pallas kernel ----------------------------------
def _gelu_kernel(x_ref, o_ref):
    x = x_ref[...].astype(jnp.float32)
    inner = _SQRT_2_OVER_PI * (x + 0.044715 * (x * x * x))
    o_ref[...] = (0.5 * x * (1.0 + jnp.tanh(inner))).astype(o_ref.dtype)  # tanh -> EUP


# -------------------------------- wrapper --------------------------------------
def pallas_gelu(x):
    """Elementwise GELU (tanh approx) via one lane-dense pallas_call."""
    orig_shape = x.shape
    orig_dtype = x.dtype
    total = x.size
    if total == 0:
        return x

    itemsize = jnp.dtype(orig_dtype).itemsize
    sublane = max(8, 32 // max(itemsize, 1))  # 8 for f32, 16 for bf16, 32 for int8

    # ---- choose a lane-dense 2-D layout (rows, cols) ----
    fast = (
        x.ndim >= 2
        and orig_shape[-1] % 128 == 0
        and orig_shape[-1] <= _TARGET_BLOCK_ELEMS // sublane
        and (total // orig_shape[-1]) % sublane == 0
    )
    if fast:
        # Free reshape for contiguous inputs; no padding copy needed.
        cols = orig_shape[-1]
        rows = total // cols
        x2d = x.reshape(rows, cols)
    else:
        # Flatten + pad to a (rows, 512) slab; every tile is full (no masked vst).
        cols = _LANES_FALLBACK
        rows = pl.cdiv(total, cols)
        rows = ((rows + sublane - 1) // sublane) * sublane

    # ---- pick the biggest row-block that keeps ~_TARGET_BLOCK_ELEMS per buffer ----
    block_rows = (_TARGET_BLOCK_ELEMS // cols) // sublane * sublane
    block_rows = max(sublane, min(rows, block_rows))
    rows_padded = ((rows + block_rows - 1) // block_rows) * block_rows

    if fast:
        if rows_padded != rows:
            x2d = jnp.pad(x2d, ((0, rows_padded - rows), (0, 0)))
    else:
        x_flat = jnp.ravel(x)
        pad = rows_padded * cols - total
        if pad:
            x_flat = jnp.pad(x_flat, (0, pad))
        x2d = x_flat.reshape(rows_padded, cols)

    out2d = pl.pallas_call(
        _gelu_kernel,
        out_shape=jax.ShapeDtypeStruct((rows_padded, cols), orig_dtype),
        grid=(rows_padded // block_rows,),
        in_specs=[pl.BlockSpec((block_rows, cols), lambda i: (i, 0))],
        out_specs=pl.BlockSpec((block_rows, cols), lambda i: (i, 0)),
        compiler_params=pltpu.CompilerParams(
            dimension_semantics=("parallel",),   # let v7x's 2 TCs split rows
            vmem_limit_bytes=64 << 20,
        ),
    )(x2d)

    if fast:
        return out2d[:rows].reshape(orig_shape)
    return out2d.reshape(-1)[:total].reshape(orig_shape)


# --------------------------- pure-JAX reference ---------------------------------
def gelu_reference(x):
    xf = x.astype(jnp.float32)
    y = 0.5 * xf * (1.0 + jnp.tanh(_SQRT_2_OVER_PI * (xf + 0.044715 * jnp.power(xf, 3))))
    return y.astype(x.dtype)


# ----------------------------------- main ---------------------------------------
if __name__ == "__main__":
    key = jax.random.PRNGKey(0)
    k1, k2, k3 = jax.random.split(key, 3)

    # Shape consistent with GELU's place in the GPT feed-forward:
    # (batch=2, seq=8, 4*emb_dim=128) with emb_dim=32 -> hits the no-pad fast path.
    x = jax.random.normal(k1, (2, 8, 128), dtype=jnp.float32) * 3.0
    y = jax.block_until_ready(pallas_gelu(x))
    assert y.shape == x.shape and y.dtype == x.dtype
    assert jnp.allclose(y, gelu_reference(x), atol=1e-4, rtol=1e-4), "mismatch (aligned)"

    # Ragged / non-(8,128)-aligned shape exercises the flatten + pad path.
    x2 = jax.random.normal(k2, (3, 5, 17), dtype=jnp.float32)
    y2 = jax.block_until_ready(pallas_gelu(x2))
    assert jnp.allclose(y2, gelu_reference(x2), atol=1e-4, rtol=1e-4), "mismatch (ragged)"

    # bf16 path (sublane packing = 16) exercises the dtype-aware tiling.
    x3 = jax.random.normal(k3, (2, 8, 256), dtype=jnp.bfloat16)
    y3 = jax.block_until_ready(pallas_gelu(x3))
    assert jnp.allclose(y3.astype(jnp.float32),
                        gelu_reference(x3).astype(jnp.float32),
                        atol=2e-2, rtol=2e-2), "mismatch (bf16)"

    print("KERNEL_OK")
</pallas_src>

<mosaic_0001>
module attributes {stable_mosaic.version = 11 : i64} {
  func.func @_gelu_kernel(%arg0: i32, %arg1: memref<16x128xf32, #tpu.memory_space<vmem>>, %arg2: memref<16x128xf32, #tpu.memory_space<vmem>>) attributes {dimension_semantics = [#tpu.dimension_semantics<parallel>], iteration_bounds = array<i64: 1>, scalar_prefetch = 0 : i64, scratch_operands = 0 : i64, tpu.core_type = #tpu.core_type<tc>, window_params = [{transform_indices = @transform_0, window_bounds = array<i64: 16, 128>}, {transform_indices = @transform_1, window_bounds = array<i64: 16, 128>}]} {
    %c0 = arith.constant 0 : index
    %c0_0 = arith.constant 0 : index
    %0 = vector.load %arg1[%c0, %c0_0] : memref<16x128xf32, #tpu.memory_space<vmem>>, vector<16x128xf32>
    %1 = arith.mulf %0, %0 : vector<16x128xf32>
    %2 = arith.mulf %1, %0 : vector<16x128xf32>
    %cst = arith.constant 4.471500e-02 : f32
    %3 = vector.broadcast %cst : f32 to vector<16x128xf32>
    %4 = arith.mulf %3, %2 : vector<16x128xf32>
    %5 = arith.addf %0, %4 : vector<16x128xf32>
    %cst_1 = arith.constant 0.797884583 : f32
    %6 = vector.broadcast %cst_1 : f32 to vector<16x128xf32>
    %7 = arith.mulf %6, %5 : vector<16x128xf32>
    %cst_2 = arith.constant 5.000000e-01 : f32
    %8 = vector.broadcast %cst_2 : f32 to vector<16x128xf32>
    %9 = arith.mulf %8, %0 : vector<16x128xf32>
    %10 = math.tanh %7 : vector<16x128xf32>
    %cst_3 = arith.constant 1.000000e+00 : f32
    %11 = vector.broadcast %cst_3 : f32 to vector<16x128xf32>
    %12 = arith.addf %11, %10 : vector<16x128xf32>
    %13 = arith.mulf %9, %12 : vector<16x128xf32>
    %c0_4 = arith.constant 0 : index
    %c0_5 = arith.constant 0 : index
    %14 = vector.load %arg2[%c0_4, %c0_5] : memref<16x128xf32, #tpu.memory_space<vmem>>, vector<16x128xf32>
    tpu.vector_store %arg2[%c0_4, %c0_5], %13 {strides = array<i32>} : memref<16x128xf32, #tpu.memory_space<vmem>>, vector<16x128xf32>,
    return
  }
  func.func @transform_0(%arg0: i32) -> (i32, i32) {
    %c0_i32 = arith.constant 0 : i32
    %c0_i32_0 = arith.constant 0 : i32
    return %arg0, %c0_i32 : i32, i32
  }
  func.func @transform_1(%arg0: i32) -> (i32, i32) {
    %c0_i32 = arith.constant 0 : i32
    %c0_i32_0 = arith.constant 0 : i32
    return %arg0, %c0_i32 : i32, i32
  }
}

</mosaic_0001>

<llo_original>
// kernel: tpu_custom_call.1
$region0: #{tpu_custom_call.1}
  #allocation0 [shape = 'u32[]', space=smem, size = 0x4, offset = 0x4, fixed_abs, tag = 'smem constant byte address 0x4 - core index']
  #allocation1 [shape = 'u32[144,128]{1,0:T(1,128)}', space=vmem, size = 0x12000, scoped, tag = 'internal scratch']
  %s0 = inlined_call_operand.hbm [shape: f32[16,128], index: 0, kind: input, shape index: {}]
  %s1 = inlined_call_operand.hbm [shape: f32[16,128], index: 1, kind: output, shape index: {}]
  %s2 = sld [smem:[#allocation0]]
  $region18: #{tpu_custom_call.1} parent=0
    _
  %s4 = ssub.s32 1, %s2
  %s5 = scalar_select 0, %s4, %s2
  $region1: #{tpu_custom_call.1} parent=0
    #allocation2 [shape = 'u8[8192]{0}', space=vmem, size = 0x2000, scoped, tag = 'input window, operand 0, single buffered']
    #allocation3 [shape = 's32[1]{0}', space=sflag, size = 0x4, scoped, tag = 'scoped memory for tpu_custom_call.1']
    #allocation4 [shape = 's32[1]{0}', space=sflag, size = 0x4, scoped, tag = 'scoped memory for tpu_custom_call.1']
    #allocation5 [shape = 'u8[8192]{0}', space=vmem, size = 0x2000, scoped, tag = 'output window, operand 0, single buffered']
    %6 = vsyncpa [#allocation3], 0
    %7 = vsyncpa [#allocation4], 0
    // Predicated region
    $region2: #{tpu_custom_call.1} parent=1 // pred_check
      _
    $region3: #{tpu_custom_call.1} parent=1 // pred_check_branch
      %9 = sbr.rel (0) target = $region5
    $region4: #{tpu_custom_call.1} parent=1 // pred_region
      %s11 = ssub.s32 256, 256
      %12 = vsyncadd [#allocation3], %s11
      %s13 = sshll.u32 [#allocation2], 4
      %s14 = int_to_ptr.vmem [resolvable:$true] %s13
      %19 = dma.hbm_to_vmem [thread:$0]  %s0, 256, %s14, [#allocation3], 128, 128, 8
    $region5: #{tpu_custom_call.1} parent=1 // pred_fallthru
      _
    // Predicated region
    $region6: #{tpu_custom_call.1} parent=1 // pred_check
      _
    $region7: #{tpu_custom_call.1} parent=1 // pred_check_branch
      %21 = sbr.rel (0) target = $region9
    $region8: #{tpu_custom_call.1} parent=1 // pred_region
      %22 = dma.done [#allocation3], 256
    $region9: #{tpu_custom_call.1} parent=1 // pred_fallthru
      _
    %v23 = vld [vmem:[#allocation2] sm:$0xff]
    %v24 = vld [vmem:[#allocation2 + $0x8] sm:$0xff]
    %v25 = vmul.f32 %v23, %v23
    %v26 = vmul.f32 %v24, %v24
    %v27 = vmul.f32 %v25, %v23
    %v28 = vmul.f32 %v26, %v24
    %v29 = vmul.f32 %v27, 0.044715
    %v30 = vmul.f32 %v28, 0.044715
    %v31 = vadd.f32 %v23, %v29
    %v32 = vadd.f32 %v24, %v30
    %v33 = vmul.f32 %v31, 0.7978846
    %v34 = vmul.f32 %v32, 0.7978846
    %v35 = vmul.f32 %v23, 0.5
    %v36 = vmul.f32 %v24, 0.5
    %v37 = vtanh.pop %v33
    %v38 = vtanh.pop %v34
    %v39 = vadd.f32 %v37, 1.0
    %v40 = vadd.f32 %v38, 1.0
    %v41 = vmul.f32 %v35, %v39
    %v42 = vmul.f32 %v36, %v40
    %43 = vst [vmem:[#allocation5] sm:$0xff] %v41
    %44 = vst [vmem:[#allocation5 + $0x8] sm:$0xff] %v42
    // Predicated region
    $region10: #{tpu_custom_call.1} parent=1 // pred_check
      _
    $region11: #{tpu_custom_call.1} parent=1 // pred_check_branch
      %46 = sbr.rel (0) target = $region13
    $region12: #{tpu_custom_call.1} parent=1 // pred_region
      %s48 = ssub.s32 256, 256
      %49 = vsyncadd [#allocation4], %s48
      %s50 = sshll.u32 [#allocation5], 4
      %s51 = int_to_ptr.vmem [resolvable:$true] %s50
      %56 = dma.vmem_to_hbm [thread:$0]  %s51, 256, %s1, [#allocation4], 128, 128, 8
    $region13: #{tpu_custom_call.1} parent=1 // pred_fallthru
      _
    // Predicated region
    $region14: #{tpu_custom_call.1} parent=1 // pred_check
      _
    $region15: #{tpu_custom_call.1} parent=1 // pred_check_branch
      %58 = sbr.rel (0) target = $region17
    $region16: #{tpu_custom_call.1} parent=1 // pred_region
      %59 = dma.done [#allocation4], 256
    $region17: #{tpu_custom_call.1} parent=1 // pred_fallthru
      _
    %60 = vsyncpa [#allocation3], 1
    %61 = vsyncpa [#allocation4], 1

</llo_original>
